<compile_context>
chip_gen: v7x
topology: tpu7x:2x2x1
jax: 0.10.0
libtpu: 0.0.40
codegen_flags: <defaults>
</compile_context>

<pallas_src>
import functools

import jax
import jax.numpy as jnp
from jax.experimental import pallas as pl
from jax.experimental.pallas import tpu as pltpu


def _round_up(a, b):
    return ((a + b - 1) // b) * b


def fm_kernel(x_ref, w0_ref, wt_ref, nhs_ref, o_ref, *, dim):
    # x tile (TB, F); upcast to f32 in VMEM (bf16 producers keep the HBM
    # stream halved, the square term stays f32), then one XLU transpose so
    # batch rows live on the lane axis for the rest of the kernel.
    xt = x_ref[...].astype(jnp.float32).T                      # (F, TB)
    w0 = w0_ref[0, 0]                                          # scalar (SMEM)

    # wt rows 0..D-1 = w2^T, row D = w1^T  ->  yt = [w2|w1]^T @ x^T
    yt = jnp.dot(wt_ref[...], xt,
                 preferred_element_type=jnp.float32)           # (D+1, TB)
    # sum_of_square folded into a matvec against -0.5 * sum_d(w2^2).
    sos = jnp.dot(nhs_ref[...], xt * xt,
                  preferred_element_type=jnp.float32)          # (1, TB)

    lin = yt[dim:dim + 1, :]                                   # x @ w1, (1, TB)
    # square_of_sum = sum over the D embedding rows; yt also holds the lin
    # row, so subtract lin^2 instead of slicing inside the 8-sublane tile.
    ssq = jnp.sum(yt * yt, axis=0, keepdims=True) - lin * lin  # (1, TB)

    logits = jax.nn.sigmoid(w0 + lin + 0.5 * ssq + sos)        # lane-dense EUP
    o_ref[...] = logits.astype(o_ref.dtype)                    # (1, TB) store


def fm_forward(x, w0, w1, w2, *, target_tile_bytes=1 << 20, max_tb=8192):
    """FM forward. x: (B, F), w0: (1,1), w1: (F,1), w2: (F,D) -> (B,1) f32."""
    B, F = x.shape
    D = w2.shape[1]

    # Hoisted weight prep (tiny; constant-folded under jit for fixed weights).
    w2f = w2.astype(jnp.float32)
    wt = jnp.concatenate([w2f, w1.astype(jnp.float32)], axis=1).T   # (D+1, F)
    nhs = (-0.5 * jnp.sum(w2f * w2f, axis=1))[None, :]              # (1, F)
    w0 = w0.astype(jnp.float32).reshape(1, 1)

    # Byte-sized batch tile, multiple of 128 rows (so per-step output blocks
    # are lane-dense / unmasked except for the single ragged last block).
    itemsize = jnp.dtype(x.dtype).itemsize
    tb = max(128, (target_tile_bytes // max(F * itemsize, 1)) // 128 * 128)
    tb = min(tb, max_tb)
    # Keep >= 2 grid steps when the batch allows it (v7x has 2 TensorCores).
    tb = min(tb, max(128, _round_up(pl.cdiv(B, 2), 128)))
    # Never tile beyond the (128-aligned) batch.
    tb = min(tb, _round_up(B, 128))
    grid = (pl.cdiv(B, tb),)

    out = pl.pallas_call(
        functools.partial(fm_kernel, dim=D),
        out_shape=jax.ShapeDtypeStruct((1, B), jnp.float32),
        grid_spec=pltpu.PrefetchScalarGridSpec(
            num_scalar_prefetch=0,
            grid=grid,
            in_specs=[
                pl.BlockSpec((tb, F), lambda i: (i, 0)),             # x tile
                pl.BlockSpec(memory_space=pltpu.MemorySpace.SMEM),   # w0 scalar
                pl.BlockSpec((D + 1, F), lambda i: (0, 0)),          # [w2 | w1]^T
                pl.BlockSpec((1, F), lambda i: (0, 0)),              # -0.5*sum(w2^2)
            ],
            out_specs=pl.BlockSpec((1, tb), lambda i: (0, i)),       # lane-dense
        ),
        compiler_params=pltpu.CompilerParams(
            dimension_semantics=("parallel",)),
    )(x, w0, wt, nhs)

    return out.reshape(B, 1)


def xavier_uniform(key, shape):
    fan_in, fan_out = shape[0], shape[1]
    bound = (6.0 / (fan_in + fan_out)) ** 0.5
    return jax.random.uniform(key, shape, jnp.float32, -bound, bound)


def fm_reference(x, w0, w1, w2):
    lr_out = w0 + x @ w1
    square_of_sum = (x @ w2) ** 2
    sum_of_square = (x ** 2) @ (w2 ** 2)
    cross_out = 0.5 * jnp.sum(square_of_sum - sum_of_square, axis=1, keepdims=True)
    return jax.nn.sigmoid(lr_out + cross_out)


if __name__ == "__main__":
    n_features = 32   # number of features
    dim = 16          # latent dimension
    batch = 16

    key = jax.random.PRNGKey(0)
    k_x, k_w0, k_w1, k_w2 = jax.random.split(key, 4)

    # Deterministic parameter init (matches torch.nn.init.xavier_uniform_ shapes)
    w0 = xavier_uniform(k_w0, (1, 1))
    w1 = xavier_uniform(k_w1, (n_features, 1))
    w2 = xavier_uniform(k_w2, (n_features, dim))

    x = jax.random.normal(k_x, (batch, n_features), dtype=jnp.float32)

    out = fm_forward(x, w0, w1, w2)
    out = jax.block_until_ready(out)

    ref = fm_reference(x, w0, w1, w2)
    assert out.shape == (batch, 1)
    assert jnp.allclose(out, ref, atol=1e-5, rtol=1e-5)

    print("KERNEL_OK")
</pallas_src>

<mosaic_0001>
module attributes {stable_mosaic.version = 11 : i64} {
  func.func @fm_kernel(%arg0: i32, %arg1: memref<128x32xf32, #tpu.memory_space<vmem>>, %arg2: memref<1x1xf32, #tpu.memory_space<smem>>, %arg3: memref<17x32xf32, #tpu.memory_space<vmem>>, %arg4: memref<1x32xf32, #tpu.memory_space<vmem>>, %arg5: memref<1x128xf32, #tpu.memory_space<vmem>>) attributes {dimension_semantics = [#tpu.dimension_semantics<parallel>], iteration_bounds = array<i64: 1>, scalar_prefetch = 0 : i64, scratch_operands = 0 : i64, tpu.core_type = #tpu.core_type<tc>, window_params = [{transform_indices = @transform_0, window_bounds = array<i64: 128, 32>}, {transform_indices = @transform_1, window_bounds = array<i64: 1, 1>}, {pipeline_mode = #tpu.pipeline_mode<synchronous>, transform_indices = @transform_2, window_bounds = array<i64: 17, 32>}, {pipeline_mode = #tpu.pipeline_mode<synchronous>, transform_indices = @transform_3, window_bounds = array<i64: 1, 32>}, {transform_indices = @transform_4, window_bounds = array<i64: 1, 128>}]} {
    %c0 = arith.constant 0 : index
    %c0_0 = arith.constant 0 : index
    %0 = vector.load %arg1[%c0, %c0_0] : memref<128x32xf32, #tpu.memory_space<vmem>>, vector<128x32xf32>
    %1 = tpu.transpose %0, [1, 0] : vector<128x32xf32> -> vector<32x128xf32>
    %c0_1 = arith.constant 0 : index
    %c0_2 = arith.constant 0 : index
    %2 = memref.load %arg2[%c0_1, %c0_2] : memref<1x1xf32, #tpu.memory_space<smem>>
    %c0_3 = arith.constant 0 : index
    %c0_4 = arith.constant 0 : index
    %3 = vector.load %arg3[%c0_3, %c0_4] : memref<17x32xf32, #tpu.memory_space<vmem>>, vector<17x32xf32>
    %cst = arith.constant dense<0.000000e+00> : vector<17x128xf32>
    %4 = tpu.matmul %3, %1, %cst {dimension_numbers = #tpu.dot_dimension_numbers<[1], [0], [0], [1], [0, 0, 1, 1], [], []>} : vector<17x32xf32>, vector<32x128xf32>, vector<17x128xf32> -> vector<17x128xf32>
    %c0_5 = arith.constant 0 : index
    %c0_6 = arith.constant 0 : index
    %5 = vector.load %arg4[%c0_5, %c0_6] : memref<1x32xf32, #tpu.memory_space<vmem>>, vector<1x32xf32>
    %6 = arith.mulf %1, %1 : vector<32x128xf32>
    %cst_7 = arith.constant dense<0.000000e+00> : vector<1x128xf32>
    %7 = tpu.matmul %5, %6, %cst_7 {dimension_numbers = #tpu.dot_dimension_numbers<[1], [0], [0], [1], [0, 0, 1, 1], [], []>} : vector<1x32xf32>, vector<32x128xf32>, vector<1x128xf32> -> vector<1x128xf32>
    %8 = vector.extract_strided_slice %4 {offsets = [16, 0], sizes = [1, 128], strides = [1, 1]} : vector<17x128xf32> to vector<1x128xf32>
    %9 = arith.mulf %4, %4 : vector<17x128xf32>
    %cst_8 = arith.constant dense<0.000000e+00> : vector<128xf32>
    %10 = vector.multi_reduction <add>, %9, %cst_8 [0] : vector<17x128xf32> to vector<128xf32>
    %11 = vector.shape_cast %10 : vector<128xf32> to vector<1x128xf32>
    %12 = arith.mulf %8, %8 : vector<1x128xf32>
    %13 = arith.subf %11, %12 : vector<1x128xf32>
    %14 = vector.broadcast %2 : f32 to vector<1x128xf32>
    %15 = arith.addf %14, %8 : vector<1x128xf32>
    %cst_9 = arith.constant 5.000000e-01 : f32
    %16 = vector.broadcast %cst_9 : f32 to vector<1x128xf32>
    %17 = arith.mulf %16, %13 : vector<1x128xf32>
    %18 = arith.addf %15, %17 : vector<1x128xf32>
    %19 = arith.addf %18, %7 : vector<1x128xf32>
    %20 = arith.negf %19 : vector<1x128xf32>
    %21 = math.exp %20 : vector<1x128xf32>
    %cst_10 = arith.constant 1.000000e+00 : f32
    %22 = vector.broadcast %cst_10 : f32 to vector<1x128xf32>
    %23 = arith.addf %22, %21 : vector<1x128xf32>
    %24 = arith.divf %22, %23 : vector<1x128xf32>
    %c0_11 = arith.constant 0 : index
    %c0_12 = arith.constant 0 : index
    %25 = vector.load %arg5[%c0_11, %c0_12] : memref<1x128xf32, #tpu.memory_space<vmem>>, vector<1x128xf32>
    tpu.vector_store %arg5[%c0_11, %c0_12], %24 {strides = array<i32>} : memref<1x128xf32, #tpu.memory_space<vmem>>, vector<1x128xf32>,
    return
  }
  func.func @transform_0(%arg0: i32) -> (i32, i32) {
    %c0_i32 = arith.constant 0 : i32
    %c0_i32_0 = arith.constant 0 : i32
    return %arg0, %c0_i32 : i32, i32
  }
  func.func @transform_1(%arg0: i32) -> (i32, i32) {
    %c0_i32 = arith.constant 0 : i32
    %c0_i32_0 = arith.constant 0 : i32
    %c0_i32_1 = arith.constant 0 : i32
    return %c0_i32, %c0_i32_0 : i32, i32
  }
  func.func @transform_2(%arg0: i32) -> (i32, i32) {
    %c0_i32 = arith.constant 0 : i32
    %c0_i32_0 = arith.constant 0 : i32
    %c0_i32_1 = arith.constant 0 : i32
    return %c0_i32, %c0_i32_0 : i32, i32
  }
  func.func @transform_3(%arg0: i32) -> (i32, i32) {
    %c0_i32 = arith.constant 0 : i32
    %c0_i32_0 = arith.constant 0 : i32
    %c0_i32_1 = arith.constant 0 : i32
    return %c0_i32, %c0_i32_0 : i32, i32
  }
  func.func @transform_4(%arg0: i32) -> (i32, i32) {
    %c0_i32 = arith.constant 0 : i32
    %c0_i32_0 = arith.constant 0 : i32
    return %c0_i32, %arg0 : i32, i32
  }
}

</mosaic_0001>

<llo_original>
// kernel: tpu_custom_call.1
$region0: #{tpu_custom_call.1}
  #allocation0 [shape = 'u32[]', space=smem, size = 0x4, offset = 0x4, fixed_abs, tag = 'smem constant byte address 0x4 - core index']
  #allocation1 [shape = 'u32[144,128]{1,0:T(1,128)}', space=vmem, size = 0x12000, scoped, tag = 'internal scratch']
  #allocation2 [shape = 'f32[1,1]{1,0:T(1,128)S(6)}', space=smem, size = 0x200, scoped, tag = 'scoped memory for tpu_custom_call.1']
  %s0 = inlined_call_operand.hbm [shape: f32[16,32], index: 0, kind: input, shape index: {}]
  %s1 = inlined_call_operand.<no memory space> [shape: f32[1,1], index: 1, kind: input, shape index: {}]
  %s2 = inlined_call_operand.hbm [shape: f32[17,32], index: 2, kind: input, shape index: {}]
  %s3 = inlined_call_operand.vmem [shape: f32[1,32], index: 3, kind: input, shape index: {}]
  %s4 = inlined_call_operand.hbm [shape: f32[1,16], index: 4, kind: output, shape index: {}]
  %s5 = sld [smem:[#allocation0]]
  $region34: #{tpu_custom_call.1} parent=0
    _
  %s7 = ssub.s32 1, %s5
  %s8 = scalar_select 0, %s7, %s5
  %9 = sst [smem:[#allocation2]] %s1
  $region1: #{tpu_custom_call.1} parent=0
    #allocation3 [shape = 'u8[65536]{0}', space=vmem, size = 0x10000, scoped, tag = 'input window, operand 0, single buffered']
    #allocation4 [shape = 's32[1]{0}', space=sflag, size = 0x4, scoped, tag = 'scoped memory for tpu_custom_call.1']
    #allocation5 [shape = 's32[1]{0}', space=sflag, size = 0x4, scoped, tag = 'scoped memory for tpu_custom_call.1']
    #allocation6 [shape = 'u8[12288]{0}', space=vmem, size = 0x3000, scoped, tag = 'input window, operand 2, single buffered']
    #allocation7 [shape = 's32[1]{0}', space=sflag, size = 0x4, scoped, tag = 'scoped memory for tpu_custom_call.1']
    #allocation8 [shape = 'u8[512]{0}', space=vmem, size = 0x400, scoped, tag = 'output window, operand 0, single buffered']
    %10 = vsyncpa [#allocation4], 0
    %11 = vsyncpa [#allocation7], 0
    %12 = vsyncpa [#allocation5], 0
    // Predicated region
    $region2: #{tpu_custom_call.1} parent=1 // pred_check
      _
    $region3: #{tpu_custom_call.1} parent=1 // pred_check_branch
      %14 = sbr.rel (0) target = $region5
    $region4: #{tpu_custom_call.1} parent=1 // pred_region
      %s16 = ssub.s32 2048, 256
      %17 = vsyncadd [#allocation4], %s16
      %s18 = sshll.u32 [#allocation3], 4
      %s19 = int_to_ptr.vmem [resolvable:$true] %s18
      %24 = dma.hbm_to_vmem [thread:$0]  %s0, 256, %s19, [#allocation4], 128, 128, 8
    $region5: #{tpu_custom_call.1} parent=1 // pred_fallthru
      _
    // Predicated region
    $region6: #{tpu_custom_call.1} parent=1 // pred_check
      _
    $region7: #{tpu_custom_call.1} parent=1 // pred_check_branch
      %26 = sbr.rel (0) target = $region9
    $region8: #{tpu_custom_call.1} parent=1 // pred_region
      _
    $region9: #{tpu_custom_call.1} parent=1 // pred_fallthru
      _
    // Predicated region
    $region10: #{tpu_custom_call.1} parent=1 // pred_check
      _
    $region11: #{tpu_custom_call.1} parent=1 // pred_check_branch
      %28 = sbr.rel (0) target = $region13
    $region12: #{tpu_custom_call.1} parent=1 // pred_region
      %s30 = ssub.s32 384, 384
      %31 = vsyncadd [#allocation7], %s30
      %s32 = sshll.u32 [#allocation6], 4
      %s33 = int_to_ptr.vmem [resolvable:$true] %s32
      %38 = dma.hbm_to_vmem [thread:$0]  %s2, 384, %s33, [#allocation7], 128, 128, 8
    $region13: #{tpu_custom_call.1} parent=1 // pred_fallthru
      _
    // Predicated region
    $region14: #{tpu_custom_call.1} parent=1 // pred_check
      _
    $region15: #{tpu_custom_call.1} parent=1 // pred_check_branch
      %40 = sbr.rel (0) target = $region17
    $region16: #{tpu_custom_call.1} parent=1 // pred_region
      _
    $region17: #{tpu_custom_call.1} parent=1 // pred_fallthru
      _
    // Predicated region
    $region18: #{tpu_custom_call.1} parent=1 // pred_check
      _
    $region19: #{tpu_custom_call.1} parent=1 // pred_check_branch
      %42 = sbr.rel (0) target = $region21
    $region20: #{tpu_custom_call.1} parent=1 // pred_region
      %43 = dma.done [#allocation4], 2048
    $region21: #{tpu_custom_call.1} parent=1 // pred_fallthru
      _
    // Predicated region
    $region22: #{tpu_custom_call.1} parent=1 // pred_check
      _
    $region23: #{tpu_custom_call.1} parent=1 // pred_check_branch
      %45 = sbr.rel (0) target = $region25
    $region24: #{tpu_custom_call.1} parent=1 // pred_region
      %46 = dma.done [#allocation7], 384
    $region25: #{tpu_custom_call.1} parent=1 // pred_fallthru
      _
    %v47 = vld [vmem:[#allocation3] sm:$0xff]
    %v48 = vld [vmem:[#allocation3 + $0x8] sm:$0xff]
    %v49 = vld [vmem:[#allocation3 + $0x10] sm:$0xff]
    %v50 = vld [vmem:[#allocation3 + $0x18] sm:$0xff]
    %v51 = vld [vmem:[#allocation3 + $0x20] sm:$0xff]
    %v52 = vld [vmem:[#allocation3 + $0x28] sm:$0xff]
    %v53 = vld [vmem:[#allocation3 + $0x30] sm:$0xff]
    %v54 = vld [vmem:[#allocation3 + $0x38] sm:$0xff]
    %v55 = vld [vmem:[#allocation3 + $0x40] sm:$0xff]
    %v56 = vld [vmem:[#allocation3 + $0x48] sm:$0xff]
    %v57 = vld [vmem:[#allocation3 + $0x50] sm:$0xff]
    %v58 = vld [vmem:[#allocation3 + $0x58] sm:$0xff]
    %v59 = vld [vmem:[#allocation3 + $0x60] sm:$0xff]
    %v60 = vld [vmem:[#allocation3 + $0x68] sm:$0xff]
    %v61 = vld [vmem:[#allocation3 + $0x70] sm:$0xff]
    %v62 = vld [vmem:[#allocation3 + $0x78] sm:$0xff]
    %63 = vxpose.xlu0.b32.start [1/16] %v47, 128
    %64 = vxpose.xlu0.b32.cont [2/16] %v48, 128
    %65 = vxpose.xlu0.b32.cont [3/16] %v49, 128
    %66 = vxpose.xlu0.b32.cont [4/16] %v50, 128
    %67 = vxpose.xlu0.b32.cont [5/16] %v51, 128
    %68 = vxpose.xlu0.b32.cont [6/16] %v52, 128
    %69 = vxpose.xlu0.b32.cont [7/16] %v53, 128
    %70 = vxpose.xlu0.b32.cont [8/16] %v54, 128
    %71 = vxpose.xlu0.b32.cont [9/16] %v55, 128
    %72 = vxpose.xlu0.b32.cont [10/16] %v56, 128
    %73 = vxpose.xlu0.b32.cont [11/16] %v57, 128
    %74 = vxpose.xlu0.b32.cont [12/16] %v58, 128
    %75 = vxpose.xlu0.b32.cont [13/16] %v59, 128
    %76 = vxpose.xlu0.b32.cont [14/16] %v60, 128
    %77 = vxpose.xlu0.b32.cont [15/16] %v61, 128
    %78 = vxpose.xlu0.b32.end [16/16] %v62, 128
    %v79 = vpop.trf.xlu0
    %v80 = vpop.trf.xlu0
    %v81 = vpop.trf.xlu0
    %v82 = vpop.trf.xlu0
    %v83 = vpop.trf.xlu0
    %v84 = vpop.trf.xlu0
    %v85 = vpop.trf.xlu0
    %v86 = vpop.trf.xlu0
    %v87 = vpop.trf.xlu0
    %v88 = vpop.trf.xlu0
    %v89 = vpop.trf.xlu0
    %v90 = vpop.trf.xlu0
    %v91 = vpop.trf.xlu0
    %v92 = vpop.trf.xlu0
    %v93 = vpop.trf.xlu0
    %v94 = vpop.trf.xlu0
    %s95 = sld [smem:[#allocation2]]
    %v96 = vld [vmem:[#allocation6] sm:$0xff]
    %v97 = vld [vmem:[#allocation6 + $0x8] sm:$0xff]
    %v98 = vld [vmem:[#allocation6 + $0x10] sm:$0x1]
    %vm99 = vcmask 261120
    %v101 = vsel %vm99, %v96, 0
    %v104 = vsel %vm99, %v97, 0
    %v107 = vsel %vm99, %v98, 0
    %109 = vmatprep.subr.mxu0 0.0
    %110 = vmatpush1.msra.mxu0 %v79
    %111 = vmatprep.subr.mxu0 0.0
    %112 = vmatpush1.msra.mxu0 %v80
    %113 = vmatprep.subr.mxu0 0.0
    %114 = vmatpush1.msra.mxu0 %v81
    %115 = vmatprep.subr.mxu0 0.0
    %116 = vmatpush1.msra.mxu0 %v82
    %117 = vmatprep.subr.mxu0 0.0
    %118 = vmatpush1.msra.mxu0 0.0
    %119 = vmatprep.subr.mxu0 0.0
    %120 = vmatpush1.msra.mxu0 0.0
    %121 = vmatprep.subr.mxu0 0.0
    %122 = vmatpush1.msra.mxu0 0.0
    %123 = vmatprep.subr.mxu0 0.0
    %124 = vmatpush1.msra.mxu0 0.0
    %125 = vmatprep.subr.mxu0 0.0
    %126 = vmatpush1.msra.mxu0 0.0
    %127 = vmatprep.subr.mxu0 0.0
    %128 = vmatpush1.msra.mxu0 0.0
    %129 = vmatprep.subr.mxu0 0.0
    %130 = vmatpush1.msra.mxu0 0.0
    %131 = vmatprep.subr.mxu0 0.0
    %132 = vmatpush1.msra.mxu0 0.0
    %133 = vmatprep.subr.mxu0 0.0
    %134 = vmatpush1.msra.mxu0 0.0
    %135 = vmatprep.subr.mxu0 0.0
    %136 = vmatpush1.msra.mxu0 0.0
    %137 = vmatprep.subr.mxu0 0.0
    %138 = vmatpush1.msra.mxu0 0.0
    %139 = vmatprep.subr.mxu0 0.0
    %140 = vmatpush1.msra.mxu0 0.0
    %141 = vmatprep.subr.mxu0 0.0
    %142 = vmatpush1.msra.mxu0 0.0
    %143 = vmatprep.subr.mxu0 0.0
    %144 = vmatpush1.msra.mxu0 0.0
    %145 = vmatprep.subr.mxu0 0.0
    %146 = vmatpush1.msra.mxu0 0.0
    %147 = vmatprep.subr.mxu0 0.0
    %148 = vmatpush1.msra.mxu0 0.0
    %149 = vmatprep.subr.mxu0 0.0
    %150 = vmatpush1.msra.mxu0 0.0
    %151 = vmatprep.subr.mxu0 0.0
    %152 = vmatpush1.msra.mxu0 0.0
    %153 = vmatprep.subr.mxu0 0.0
    %154 = vmatpush1.msra.mxu0 0.0
    %155 = vmatprep.subr.mxu0 0.0
    %156 = vmatpush1.msra.mxu0 0.0
    %157 = vmatprep.subr.mxu0 0.0
    %158 = vmatpush1.msra.mxu0 0.0
    %159 = vmatprep.subr.mxu0 0.0
    %160 = vmatpush1.msra.mxu0 0.0
    %161 = vmatprep.subr.mxu0 0.0
    %162 = vmatpush1.msra.mxu0 0.0
    %163 = vmatprep.subr.mxu0 0.0
    %164 = vmatpush1.msra.mxu0 0.0
    %165 = vmatprep.subr.mxu0 0.0
    %166 = vmatpush1.msra.mxu0 0.0
    %167 = vmatprep.subr.mxu0 0.0
    %168 = vmatpush1.msra.mxu0 0.0
    %169 = vmatprep.subr.mxu0 0.0
    %170 = vmatpush1.msra.mxu0 0.0
    %171 = vmatprep.subr.mxu0 0.0
    %172 = vmatpush1.msra.mxu0 0.0
    %173 = vmatprep.mubr.f32.mxu0 0.0
    %174 = vmatmul.mubr.f32.gmra.mrb[0].mxu0 %v101
    %v175 = vpop.f32.mrb[0].mxu0
    %v176 = vadd.f32 0.0, %v175
    %v177 = vpop.f32.mrb[0].mxu0
    %178 = vmatprep.mubr.f32.mxu0 0.0
    %179 = vmatmul.mubr.f32.gmra.mrb[0].mxu0 %v104
    %v180 = vpop.f32.mrb[0].mxu0
    %v181 = vadd.f32 0.0, %v180
    %v182 = vpop.f32.mrb[0].mxu0
    %183 = vmatprep.mubr.f32.mxu0 0.0
    %184 = vmatmul.mubr.f32.gmra.mrb[0].mxu0 %v107
    %v185 = vpop.f32.mrb[0].mxu0
    %v186 = vadd.f32 0.0, %v185
    %v187 = vpop.f32.mrb[0].mxu0
    %188 = vdwg.mxu0
    %v189 = vld [vmem:[%s3] sm:$0x1]
    %v190 = vmul.f32 %v79, %v79
    %v191 = vmul.f32 %v80, %v80
    %v192 = vmul.f32 %v81, %v81
    %v193 = vmul.f32 %v82, %v82
    %v195 = vsel %vm99, %v189, 0
    %197 = vmatprep.subr.mxu0 0.0
    %198 = vmatpush1.msra.mxu0 %v190
    %199 = vmatprep.subr.mxu0 0.0
    %200 = vmatpush1.msra.mxu0 %v191
    %201 = vmatprep.subr.mxu0 0.0
    %202 = vmatpush1.msra.mxu0 %v192
    %203 = vmatprep.subr.mxu0 0.0
    %204 = vmatpush1.msra.mxu0 %v193
    %205 = vmatprep.subr.mxu0 0.0
    %206 = vmatpush1.msra.mxu0 0.0
    %207 = vmatprep.subr.mxu0 0.0
    %208 = vmatpush1.msra.mxu0 0.0
    %209 = vmatprep.subr.mxu0 0.0
    %210 = vmatpush1.msra.mxu0 0.0
    %211 = vmatprep.subr.mxu0 0.0
    %212 = vmatpush1.msra.mxu0 0.0
    %213 = vmatprep.subr.mxu0 0.0
    %214 = vmatpush1.msra.mxu0 0.0
    %215 = vmatprep.subr.mxu0 0.0
    %216 = vmatpush1.msra.mxu0 0.0
    %217 = vmatprep.subr.mxu0 0.0
    %218 = vmatpush1.msra.mxu0 0.0
    %219 = vmatprep.subr.mxu0 0.0
    %220 = vmatpush1.msra.mxu0 0.0
    %221 = vmatprep.subr.mxu0 0.0
    %222 = vmatpush1.msra.mxu0 0.0
    %223 = vmatprep.subr.mxu0 0.0
    %224 = vmatpush1.msra.mxu0 0.0
    %225 = vmatprep.subr.mxu0 0.0
    %226 = vmatpush1.msra.mxu0 0.0
    %227 = vmatprep.subr.mxu0 0.0
    %228 = vmatpush1.msra.mxu0 0.0
    %229 = vmatprep.subr.mxu0 0.0
    %230 = vmatpush1.msra.mxu0 0.0
    %231 = vmatprep.subr.mxu0 0.0
    %232 = vmatpush1.msra.mxu0 0.0
    %233 = vmatprep.subr.mxu0 0.0
    %234 = vmatpush1.msra.mxu0 0.0
    %235 = vmatprep.subr.mxu0 0.0
    %236 = vmatpush1.msra.mxu0 0.0
    %237 = vmatprep.subr.mxu0 0.0
    %238 = vmatpush1.msra.mxu0 0.0
    %239 = vmatprep.subr.mxu0 0.0
    %240 = vmatpush1.msra.mxu0 0.0
    %241 = vmatprep.subr.mxu0 0.0
    %242 = vmatpush1.msra.mxu0 0.0
    %243 = vmatprep.subr.mxu0 0.0
    %244 = vmatpush1.msra.mxu0 0.0
    %245 = vmatprep.subr.mxu0 0.0
    %246 = vmatpush1.msra.mxu0 0.0
    %247 = vmatprep.subr.mxu0 0.0
    %248 = vmatpush1.msra.mxu0 0.0
    %249 = vmatprep.subr.mxu0 0.0
    %250 = vmatpush1.msra.mxu0 0.0
    %251 = vmatprep.subr.mxu0 0.0
    %252 = vmatpush1.msra.mxu0 0.0
    %253 = vmatprep.subr.mxu0 0.0
    %254 = vmatpush1.msra.mxu0 0.0
    %255 = vmatprep.subr.mxu0 0.0
    %256 = vmatpush1.msra.mxu0 0.0
    %257 = vmatprep.subr.mxu0 0.0
    %258 = vmatpush1.msra.mxu0 0.0
    %259 = vmatprep.subr.mxu0 0.0
    %260 = vmatpush1.msra.mxu0 0.0
    %261 = vmatprep.mubr.f32.mxu0 0.0
    %262 = vmatmul.mubr.f32.gmra.mrb[0].mxu0 %v195
    %v263 = vpop.f32.mrb[0].mxu0
    %v264 = vadd.f32 0.0, %v263
    %v265 = vpop.f32.mrb[0].mxu0
    %266 = vdwg.mxu0
    %v267 = vmul.f32 %v176, %v176
    %v268 = vmul.f32 %v181, %v181
    %v269 = vmul.f32 %v186, %v186
    %v270 = vadd.f32 %v267, %v268
    %vm271 = vcmask 1040384
    %v272 = vsel %vm271, %v269, 0.0
    %v273 = vadd.f32 %v270, %v272
    %v274 = vrot.slane %v273, 4
    %v275 = vadd.f32 %v273, %v274
    %v276 = vrot.slane %v275, 2
    %v277 = vadd.f32 %v275, %v276
    %v278 = vrot.slane %v277, 1
    %v279 = vadd.f32 %v277, %v278
    %v280 = vsub.f32 %v279, %v269
    %v281 = vstv %s95
    %v282 = vadd.f32 %v281, %v186
    %v283 = vmul.f32 %v280, 0.5
    %v284 = vadd.f32 %v282, %v283
    %v285 = vadd.f32 %v284, %v264
    %v286 = vxor.u32 %v285, 2147483648
    %v287 = vmul.f32 %v286, 1.442695
    %v288 = vpow.pop %v287
    %v289 = vadd.f32 %v288, 1.0
    %v290 = vrcp.pop %v289
    %v291 = vmul.f32 1.0, %v290
    %292 = vst [vmem:[#allocation8] sm:$0x1] %v291
    // Predicated region
    $region26: #{tpu_custom_call.1} parent=1 // pred_check
      _
    $region27: #{tpu_custom_call.1} parent=1 // pred_check_branch
      %294 = sbr.rel (0) target = $region29
    $region28: #{tpu_custom_call.1} parent=1 // pred_region
      %s296 = ssub.s32 16, 16
      %297 = vsyncadd [#allocation5], %s296
      %s299 = sshll.u32 [#allocation8], 4
      %s300 = int_to_ptr.vmem [resolvable:$true] %s299
      %302 = dma.vmem_to_hbm [thread:$0]  %s300, 16, %s4, [#allocation5]
    $region29: #{tpu_custom_call.1} parent=1 // pred_fallthru
      _
    // Predicated region
    $region30: #{tpu_custom_call.1} parent=1 // pred_check
      _
    $region31: #{tpu_custom_call.1} parent=1 // pred_check_branch
      %304 = sbr.rel (0) target = $region33
    $region32: #{tpu_custom_call.1} parent=1 // pred_region
      %305 = dma.done [#allocation5], 16
    $region33: #{tpu_custom_call.1} parent=1 // pred_fallthru
      _
    %306 = vsyncpa [#allocation4], 1
    %307 = vsyncpa [#allocation7], 1
    %308 = vsyncpa [#allocation5], 1

</llo_original>
